<compile_context>
chip_gen: v7x
topology: tpu7x:2x2x1
jax: 0.10.0
libtpu: 0.0.40
codegen_flags: <defaults>
</compile_context>

<pallas_src>
import jax
import jax.numpy as jnp
from jax import lax
from jax.experimental import pallas as pl
from jax.experimental.pallas import tpu as pltpu

C_IN = 4
C_OUT = 8
KH = KW = 3
PAD = 1
ROWS_TARGET = 1024  # rows (image-rows) per grid step for large batches


def fused_conv_relu_kernel(x0_ref, x1_ref, x2_ref, w_ref, b_ref, o_ref):
    """3x3 conv + bias + ReLU as three lane-dense MXU dots (one per kh tap).

    x{0,1,2}_ref: (rows, Wp*C_IN)  bf16  kh-shifted padded-image rows
    w_ref:        (KH, Wp*C_IN, W*C_OUT) bf16 banded weights (resident)
    b_ref:        (1, W*C_OUT)    f32   lane-dense bias row
    o_ref:        (rows, W*C_OUT) f32   last dim 128 -> unmasked vector stores
    """
    acc = jnp.dot(x0_ref[...], w_ref[0], preferred_element_type=jnp.float32)
    acc = acc + jnp.dot(x1_ref[...], w_ref[1], preferred_element_type=jnp.float32)
    acc = acc + jnp.dot(x2_ref[...], w_ref[2], preferred_element_type=jnp.float32)
    acc = acc + b_ref[...]                       # f32 bias on the f32 accumulator
    o_ref[...] = jnp.maximum(acc, 0.0).astype(o_ref.dtype)


def prepare_params(w_oihw, b, W):
    """One-time parameter prep (hoisted out of the per-forward path).

    Builds, for each kh, a banded matrix W_kh of shape (Wp*C_IN, W*C_OUT) with
    W_kh[(w+kw)*C_IN + c, w*C_OUT + o] = w_oihw[o, c, kh, kw], so that
    row_view_kh @ W_kh sums the kw and c taps directly into the lane-dense
    (w*C_OUT + o) output layout.
    """
    Wp = W + 2 * PAD
    mats = []
    for kh in range(KH):
        acc = jnp.zeros((Wp * C_IN, W * C_OUT), jnp.float32)
        for kw in range(KW):
            tap = w_oihw[:, :, kh, kw].T                      # (C_IN, C_OUT)
            blk = jnp.kron(jnp.eye(W, dtype=jnp.float32), tap)  # (W*C_IN, W*C_OUT)
            acc = acc + jnp.pad(blk, ((kw * C_IN, (Wp - W - kw) * C_IN), (0, 0)))
        mats.append(acc)
    w_band = jnp.stack(mats).astype(jnp.bfloat16)             # (KH, Wp*C_IN, W*C_OUT)
    b_row = jnp.tile(b, W).reshape(1, W * C_OUT).astype(jnp.float32)
    return w_band, b_row


def custom_data_parallel_forward(x_nchw, w_band, b_row):
    """Forward of _CustomDataParallel(inner_model) on NCHW input x.

    x_nchw: (N, C_in, H, W) float32
    w_band: (KH, (W+2)*C_IN, W*C_OUT) bfloat16   from prepare_params
    b_row:  (1, W*C_OUT) float32                 from prepare_params
    returns (N, C_out, H, W) float32
    """
    N, C, H, W = x_nchw.shape
    assert C == C_IN
    Wp = W + 2 * PAD
    K_LANE = Wp * C_IN           # 72 for W=16
    N_LANE = W * C_OUT           # 128 for W=16 -> lane-dense output
    assert w_band.shape == (KH, K_LANE, N_LANE)
    assert b_row.shape == (1, N_LANE)

    # ---- grid sized by rows (not a fixed 2-way split) ----
    b_tile = max(1, min(N, ROWS_TARGET // H))     # images per grid step
    num_steps = pl.cdiv(N, b_tile)
    N_pad = num_steps * b_tile
    if N_pad != N:
        # Pad the *raw* batch, never an amplified slab; rows sliced off below.
        x_nchw = jnp.pad(x_nchw, ((0, N_pad - N), (0, 0), (0, 0), (0, 0)))

    # ---- wrapper glue: NHWC, spatial zero-pad, bf16, kh-shifted row views ----
    x_nhwc = jnp.transpose(x_nchw.astype(jnp.bfloat16), (0, 2, 3, 1))  # N,H,W,C
    x_padded = jnp.pad(x_nhwc, ((0, 0), (PAD, PAD), (PAD, PAD), (0, 0)))
    rows = N_pad * H
    # Row r = n*H + h, column j = w'*C_IN + c  ->  x_pad[n, h+kh, w', c]
    x_sh = [x_padded[:, kh:kh + H, :, :].reshape(rows, K_LANE) for kh in range(KH)]

    rows_per_block = b_tile * H   # multiple of 8 (H=16) -> valid sublane block

    out_flat = pl.pallas_call(
        fused_conv_relu_kernel,
        out_shape=jax.ShapeDtypeStruct((rows, N_LANE), jnp.float32),
        grid_spec=pltpu.PrefetchScalarGridSpec(
            num_scalar_prefetch=0,
            grid=(num_steps,),
            in_specs=[
                pl.BlockSpec((rows_per_block, K_LANE), lambda i: (i, 0)),
                pl.BlockSpec((rows_per_block, K_LANE), lambda i: (i, 0)),
                pl.BlockSpec((rows_per_block, K_LANE), lambda i: (i, 0)),
                # constant index_map -> DMA'd once, resident across steps
                pl.BlockSpec((KH, K_LANE, N_LANE), lambda i: (0, 0, 0)),
                pl.BlockSpec((1, N_LANE), lambda i: (0, 0)),
            ],
            out_specs=pl.BlockSpec((rows_per_block, N_LANE), lambda i: (i, 0)),
        ),
        compiler_params=pltpu.CompilerParams(
            dimension_semantics=("parallel",)),
    )(x_sh[0], x_sh[1], x_sh[2], w_band, b_row)

    out = out_flat[:N * H].reshape(N, H, W, C_OUT)
    # TODO(synk): skip this NCHW relayout (a full extra HBM pass) if the
    # downstream consumer accepts NHWC; kept to match PyTorch Conv2d semantics.
    return jnp.transpose(out, (0, 3, 1, 2))


def _reference(x_nchw, w_oihw, b):
    y = lax.conv_general_dilated(
        x_nchw, w_oihw, window_strides=(1, 1),
        padding=((PAD, PAD), (PAD, PAD)),
        dimension_numbers=("NCHW", "OIHW", "NCHW"),
        precision=lax.Precision.HIGHEST)
    return jnp.maximum(y + b.reshape(1, C_OUT, 1, 1), 0.0)


if __name__ == "__main__":
    key = jax.random.PRNGKey(0)
    kx, kw, kb = jax.random.split(key, 3)

    # Small shapes consistent with the (representative) wrapped conv model.
    N, H, W = 2, 16, 16
    x = jax.random.normal(kx, (N, C_IN, H, W), dtype=jnp.float32)
    w = 0.1 * jax.random.normal(kw, (C_OUT, C_IN, KH, KW), dtype=jnp.float32)
    b = 0.05 * jax.random.normal(kb, (C_OUT,), dtype=jnp.float32)

    # One-time parameter prep (per parameter update), outside the forward path.
    w_band, b_row = prepare_params(w, b, W)

    fwd = jax.jit(custom_data_parallel_forward)
    out = jax.block_until_ready(fwd(x, w_band, b_row))

    # Compare against an f32 reference evaluated on the same bf16-rounded
    # operands (the kernel computes bf16 x bf16 -> f32 accumulate).
    x_q = x.astype(jnp.bfloat16).astype(jnp.float32)
    w_q = w.astype(jnp.bfloat16).astype(jnp.float32)
    ref = _reference(x_q, w_q, b)
    assert out.shape == (N, C_OUT, H, W)
    assert jnp.allclose(out, ref, atol=1e-3, rtol=1e-3), "mismatch vs reference"

    # TODO(synk): _CustomDataParallel wraps an arbitrary model; only the
    # DataParallel batch-split forward of a representative conv+ReLU inner
    # model is implemented.  True multi-chip scatter/gather needs shard_map
    # around this call (the Pallas grid only spans one chip's TensorCores).
    print("KERNEL_OK")
</pallas_src>

<mosaic_0001>
module attributes {stable_mosaic.version = 11 : i64} {
  func.func @fused_conv_relu_kernel(%arg0: i32, %arg1: memref<32x72xbf16, #tpu.memory_space<vmem>>, %arg2: memref<32x72xbf16, #tpu.memory_space<vmem>>, %arg3: memref<32x72xbf16, #tpu.memory_space<vmem>>, %arg4: memref<3x72x128xbf16, #tpu.memory_space<vmem>>, %arg5: memref<1x128xf32, #tpu.memory_space<vmem>>, %arg6: memref<32x128xf32, #tpu.memory_space<vmem>>) attributes {dimension_semantics = [#tpu.dimension_semantics<parallel>], iteration_bounds = array<i64: 1>, scalar_prefetch = 0 : i64, scratch_operands = 0 : i64, tpu.core_type = #tpu.core_type<tc>, window_params = [{transform_indices = @transform_0, window_bounds = array<i64: 32, 72>}, {transform_indices = @transform_1, window_bounds = array<i64: 32, 72>}, {transform_indices = @transform_2, window_bounds = array<i64: 32, 72>}, {pipeline_mode = #tpu.pipeline_mode<synchronous>, transform_indices = @transform_3, window_bounds = array<i64: 3, 72, 128>}, {pipeline_mode = #tpu.pipeline_mode<synchronous>, transform_indices = @transform_4, window_bounds = array<i64: 1, 128>}, {transform_indices = @transform_5, window_bounds = array<i64: 32, 128>}]} {
    %c0 = arith.constant 0 : index
    %c0_0 = arith.constant 0 : index
    %0 = vector.load %arg1[%c0, %c0_0] : memref<32x72xbf16, #tpu.memory_space<vmem>>, vector<32x72xbf16>
    %c0_1 = arith.constant 0 : index
    %c0_2 = arith.constant 0 : index
    %c0_3 = arith.constant 0 : index
    %1 = vector.load %arg4[%c0_1, %c0_2, %c0_3] : memref<3x72x128xbf16, #tpu.memory_space<vmem>>, vector<1x72x128xbf16>
    %2 = vector.shape_cast %1 : vector<1x72x128xbf16> to vector<72x128xbf16>
    %cst = arith.constant dense<0.000000e+00> : vector<32x128xf32>
    %3 = tpu.matmul %0, %2, %cst {dimension_numbers = #tpu.dot_dimension_numbers<[1], [0], [0], [1], [0, 0, 1, 1], [], []>} : vector<32x72xbf16>, vector<72x128xbf16>, vector<32x128xf32> -> vector<32x128xf32>
    %c0_4 = arith.constant 0 : index
    %c0_5 = arith.constant 0 : index
    %4 = vector.load %arg2[%c0_4, %c0_5] : memref<32x72xbf16, #tpu.memory_space<vmem>>, vector<32x72xbf16>
    %c1 = arith.constant 1 : index
    %c0_6 = arith.constant 0 : index
    %c0_7 = arith.constant 0 : index
    %5 = vector.load %arg4[%c1, %c0_6, %c0_7] : memref<3x72x128xbf16, #tpu.memory_space<vmem>>, vector<1x72x128xbf16>
    %6 = vector.shape_cast %5 : vector<1x72x128xbf16> to vector<72x128xbf16>
    %cst_8 = arith.constant dense<0.000000e+00> : vector<32x128xf32>
    %7 = tpu.matmul %4, %6, %cst_8 {dimension_numbers = #tpu.dot_dimension_numbers<[1], [0], [0], [1], [0, 0, 1, 1], [], []>} : vector<32x72xbf16>, vector<72x128xbf16>, vector<32x128xf32> -> vector<32x128xf32>
    %8 = arith.addf %3, %7 : vector<32x128xf32>
    %c0_9 = arith.constant 0 : index
    %c0_10 = arith.constant 0 : index
    %9 = vector.load %arg3[%c0_9, %c0_10] : memref<32x72xbf16, #tpu.memory_space<vmem>>, vector<32x72xbf16>
    %c2 = arith.constant 2 : index
    %c0_11 = arith.constant 0 : index
    %c0_12 = arith.constant 0 : index
    %10 = vector.load %arg4[%c2, %c0_11, %c0_12] : memref<3x72x128xbf16, #tpu.memory_space<vmem>>, vector<1x72x128xbf16>
    %11 = vector.shape_cast %10 : vector<1x72x128xbf16> to vector<72x128xbf16>
    %cst_13 = arith.constant dense<0.000000e+00> : vector<32x128xf32>
    %12 = tpu.matmul %9, %11, %cst_13 {dimension_numbers = #tpu.dot_dimension_numbers<[1], [0], [0], [1], [0, 0, 1, 1], [], []>} : vector<32x72xbf16>, vector<72x128xbf16>, vector<32x128xf32> -> vector<32x128xf32>
    %13 = arith.addf %8, %12 : vector<32x128xf32>
    %c0_14 = arith.constant 0 : index
    %c0_15 = arith.constant 0 : index
    %14 = vector.load %arg5[%c0_14, %c0_15] : memref<1x128xf32, #tpu.memory_space<vmem>>, vector<1x128xf32>
    %15 = vector.broadcast %14 : vector<1x128xf32> to vector<32x128xf32>
    %16 = arith.addf %13, %15 : vector<32x128xf32>
    %cst_16 = arith.constant 0.000000e+00 : f32
    %17 = vector.broadcast %cst_16 : f32 to vector<32x128xf32>
    %18 = arith.maximumf %16, %17 : vector<32x128xf32>
    %c0_17 = arith.constant 0 : index
    %c0_18 = arith.constant 0 : index
    %19 = vector.load %arg6[%c0_17, %c0_18] : memref<32x128xf32, #tpu.memory_space<vmem>>, vector<32x128xf32>
    tpu.vector_store %arg6[%c0_17, %c0_18], %18 {strides = array<i32>} : memref<32x128xf32, #tpu.memory_space<vmem>>, vector<32x128xf32>,
    return
  }
  func.func @transform_0(%arg0: i32) -> (i32, i32) {
    %c0_i32 = arith.constant 0 : i32
    %c0_i32_0 = arith.constant 0 : i32
    return %arg0, %c0_i32 : i32, i32
  }
  func.func @transform_1(%arg0: i32) -> (i32, i32) {
    %c0_i32 = arith.constant 0 : i32
    %c0_i32_0 = arith.constant 0 : i32
    return %arg0, %c0_i32 : i32, i32
  }
  func.func @transform_2(%arg0: i32) -> (i32, i32) {
    %c0_i32 = arith.constant 0 : i32
    %c0_i32_0 = arith.constant 0 : i32
    return %arg0, %c0_i32 : i32, i32
  }
  func.func @transform_3(%arg0: i32) -> (i32, i32, i32) {
    %c0_i32 = arith.constant 0 : i32
    %c0_i32_0 = arith.constant 0 : i32
    %c0_i32_1 = arith.constant 0 : i32
    %c0_i32_2 = arith.constant 0 : i32
    return %c0_i32, %c0_i32_0, %c0_i32_1 : i32, i32, i32
  }
  func.func @transform_4(%arg0: i32) -> (i32, i32) {
    %c0_i32 = arith.constant 0 : i32
    %c0_i32_0 = arith.constant 0 : i32
    %c0_i32_1 = arith.constant 0 : i32
    return %c0_i32, %c0_i32_0 : i32, i32
  }
  func.func @transform_5(%arg0: i32) -> (i32, i32) {
    %c0_i32 = arith.constant 0 : i32
    %c0_i32_0 = arith.constant 0 : i32
    return %arg0, %c0_i32 : i32, i32
  }
}

</mosaic_0001>

<llo_original>
// kernel: custom_data_parallel_forward.1
$region0: #{custom_data_parallel_forward.1}
  #allocation0 [shape = 'u32[]', space=smem, size = 0x4, offset = 0x4, fixed_abs, tag = 'smem constant byte address 0x4 - core index']
  #allocation1 [shape = 'u32[144,128]{1,0:T(1,128)}', space=vmem, size = 0x12000, scoped, tag = 'internal scratch']
  %s0 = inlined_call_operand.vmem [shape: bf16[32,72], index: 0, kind: input, shape index: {}]
  %s1 = inlined_call_operand.vmem [shape: bf16[32,72], index: 1, kind: input, shape index: {}]
  %s2 = inlined_call_operand.vmem [shape: bf16[32,72], index: 2, kind: input, shape index: {}]
  %s3 = inlined_call_operand.vmem [shape: bf16[3,72,128], index: 3, kind: input, shape index: {}]
  %s4 = inlined_call_operand.vmem [shape: f32[1,128], index: 4, kind: input, shape index: {}]
  %s5 = inlined_call_operand.vmem [shape: f32[32,128], index: 5, kind: output, shape index: {}]
  %s6 = sld [smem:[#allocation0]]
  $region30: #{custom_data_parallel_forward.1} parent=0
    _
  %s8 = ssub.s32 1, %s6
  %s9 = scalar_select 0, %s8, %s6
  // Predicated region
  $region2: #{custom_data_parallel_forward.1} parent=0 // pred_check
    _
  $region3: #{custom_data_parallel_forward.1} parent=0 // pred_check_branch
    %11 = sbr.rel (0) target = $region5
  $region4: #{custom_data_parallel_forward.1} parent=0 // pred_region
    _
  $region5: #{custom_data_parallel_forward.1} parent=0 // pred_fallthru
    _
  // Predicated region
  $region6: #{custom_data_parallel_forward.1} parent=0 // pred_check
    _
  $region7: #{custom_data_parallel_forward.1} parent=0 // pred_check_branch
    %13 = sbr.rel (0) target = $region9
  $region8: #{custom_data_parallel_forward.1} parent=0 // pred_region
    _
  $region9: #{custom_data_parallel_forward.1} parent=0 // pred_fallthru
    _
  // Predicated region
  $region10: #{custom_data_parallel_forward.1} parent=0 // pred_check
    _
  $region11: #{custom_data_parallel_forward.1} parent=0 // pred_check_branch
    %15 = sbr.rel (0) target = $region13
  $region12: #{custom_data_parallel_forward.1} parent=0 // pred_region
    _
  $region13: #{custom_data_parallel_forward.1} parent=0 // pred_fallthru
    _
  // Predicated region
  $region14: #{custom_data_parallel_forward.1} parent=0 // pred_check
    _
  $region15: #{custom_data_parallel_forward.1} parent=0 // pred_check_branch
    %17 = sbr.rel (0) target = $region17
  $region16: #{custom_data_parallel_forward.1} parent=0 // pred_region
    _
  $region17: #{custom_data_parallel_forward.1} parent=0 // pred_fallthru
    _
  // Predicated region
  $region18: #{custom_data_parallel_forward.1} parent=0 // pred_check
    _
  $region19: #{custom_data_parallel_forward.1} parent=0 // pred_check_branch
    %19 = sbr.rel (0) target = $region21
  $region20: #{custom_data_parallel_forward.1} parent=0 // pred_region
    _
  $region21: #{custom_data_parallel_forward.1} parent=0 // pred_fallthru
    _
  %v21 = vld [vmem:[%s0] sm:$0xf]
  %v22 = vld [vmem:[%s0 + $0x4] sm:$0xf]
  %v23 = vld [vmem:[%s0 + $0x8] sm:$0xf]
  %v24 = vld [vmem:[%s0 + $0xc] sm:$0xf]
  %v25 = vld [vmem:[%s3] sm:$0xf]
  %v26 = vld [vmem:[%s3 + $0x4] sm:$0xf]
  %v27 = vld [vmem:[%s3 + $0x8] sm:$0xf]
  %v28 = vld [vmem:[%s3 + $0xc] sm:$0xf]
  %v29 = vld [vmem:[%s3 + $0x10] sm:$0xf]
  %v30 = vld [vmem:[%s3 + $0x14] sm:$0xf]
  %v31 = vld [vmem:[%s3 + $0x18] sm:$0xf]
  %v32 = vld [vmem:[%s3 + $0x1c] sm:$0xf]
  %v33 = vld [vmem:[%s3 + $0x20] sm:$0xf]
  %v34 = vld [vmem:[%s1] sm:$0xf]
  %v35 = vld [vmem:[%s1 + $0x4] sm:$0xf]
  %v36 = vld [vmem:[%s1 + $0x8] sm:$0xf]
  %v37 = vld [vmem:[%s1 + $0xc] sm:$0xf]
  %s38 = scalar_lea.vmem %s3, 36
  %v39 = vld [vmem:[%s38] sm:$0xf]
  %v40 = vld [vmem:[%s38 + $0x4] sm:$0xf]
  %v41 = vld [vmem:[%s38 + $0x8] sm:$0xf]
  %v42 = vld [vmem:[%s38 + $0xc] sm:$0xf]
  %v43 = vld [vmem:[%s38 + $0x10] sm:$0xf]
  %v44 = vld [vmem:[%s38 + $0x14] sm:$0xf]
  %v45 = vld [vmem:[%s38 + $0x18] sm:$0xf]
  %v46 = vld [vmem:[%s38 + $0x1c] sm:$0xf]
  %v47 = vld [vmem:[%s38 + $0x20] sm:$0xf]
  %v52 = vunpack.c.l.b16 %v34
  %v53 = vunpack.c.l.b16 %v35
  %v54 = vunpack.c.l.b16 %v36
  %v55 = vunpack.c.l.b16 %v37
  %v56 = vpack.c.b16 %v53, %v52
  %v57 = vpack.c.b16 %v55, %v54
  %v67 = vunpack.c.l.b16 %v39
  %v68 = vunpack.c.l.b16 %v40
  %v69 = vunpack.c.l.b16 %v41
  %v70 = vunpack.c.l.b16 %v42
  %v71 = vunpack.c.l.b16 %v43
  %v72 = vunpack.c.l.b16 %v44
  %v73 = vunpack.c.l.b16 %v45
  %v74 = vunpack.c.l.b16 %v46
  %v75 = vunpack.c.l.b16 %v47
  %v76 = vpack.c.b16 %v68, %v67
  %v77 = vpack.c.b16 %v70, %v69
  %v78 = vpack.c.b16 %v72, %v71
  %v79 = vpack.c.b16 %v74, %v73
  %v80 = vpack.c.b16 %v75, %v75
  %vm85 = vcmask 588800
  %v87 = vsel %vm85, %v56, 0
  %v90 = vsel %vm85, %v57, 0
  %vm92 = vcmask 1043456
  %v94 = vsel %vm92, %v80, 0
  %96 = vmatprep.subr.bf16.mxu0 0
  %97 = vmatpush1.bf16.msra.mxu0 %v76
  %98 = vmatprep.subr.bf16.mxu0 0
  %99 = vmatpush1.bf16.msra.mxu0 %v77
  %100 = vmatprep.subr.bf16.mxu0 0
  %101 = vmatpush1.bf16.msra.mxu0 %v78
  %102 = vmatprep.subr.bf16.mxu0 0
  %103 = vmatpush1.bf16.msra.mxu0 %v79
  %104 = vmatprep.subr.bf16.mxu0 0
  %105 = vmatpush1.bf16.msra.mxu0 %v94
  %106 = vmatprep.subr.bf16.mxu0 0
  %107 = vmatpush1.bf16.msra.mxu0 0
  %108 = vmatprep.subr.bf16.mxu0 0
  %109 = vmatpush1.bf16.msra.mxu0 0
  %110 = vmatprep.subr.bf16.mxu0 0
  %111 = vmatpush1.bf16.msra.mxu0 0
  %112 = vmatprep.subr.bf16.mxu0 0
  %113 = vmatpush1.bf16.msra.mxu0 0
  %114 = vmatprep.subr.bf16.mxu0 0
  %115 = vmatpush1.bf16.msra.mxu0 0
  %116 = vmatprep.subr.bf16.mxu0 0
  %117 = vmatpush1.bf16.msra.mxu0 0
  %118 = vmatprep.subr.bf16.mxu0 0
  %119 = vmatpush1.bf16.msra.mxu0 0
  %120 = vmatprep.subr.bf16.mxu0 0
  %121 = vmatpush1.bf16.msra.mxu0 0
  %122 = vmatprep.subr.bf16.mxu0 0
  %123 = vmatpush1.bf16.msra.mxu0 0
  %124 = vmatprep.subr.bf16.mxu0 0
  %125 = vmatpush1.bf16.msra.mxu0 0
  %126 = vmatprep.subr.bf16.mxu0 0
  %127 = vmatpush1.bf16.msra.mxu0 0
  %128 = vmatprep.mubr.bf16.mxu0 0
  %129 = vmatmul.mubr.bf16.gmra.mrb[0].mxu0 %v87
  %v130 = vpop.f32.mrb[0].mxu0
  %v131 = vadd.f32 0.0, %v130
  %v132 = vpop.f32.mrb[0].mxu0
  %v133 = vpop.f32.mrb[0].mxu0
  %v134 = vadd.f32 0.0, %v133
  %v135 = vpop.f32.mrb[0].mxu0
  %136 = vmatprep.mubr.bf16.mxu0 0
  %137 = vmatmul.mubr.bf16.gmra.mrb[0].mxu0 %v90
  %v138 = vpop.f32.mrb[0].mxu0
  %v139 = vadd.f32 0.0, %v138
  %v140 = vpop.f32.mrb[0].mxu0
  %v141 = vpop.f32.mrb[0].mxu0
  %v142 = vadd.f32 0.0, %v141
  %v143 = vpop.f32.mrb[0].mxu0
  %144 = vdwg.mxu0
  %v149 = vunpack.c.l.b16 %v21
  %v150 = vunpack.c.l.b16 %v22
  %v151 = vunpack.c.l.b16 %v23
  %v152 = vunpack.c.l.b16 %v24
  %v153 = vpack.c.b16 %v150, %v149
  %v154 = vpack.c.b16 %v152, %v151
  %v164 = vunpack.c.l.b16 %v25
  %v165 = vunpack.c.l.b16 %v26
  %v166 = vunpack.c.l.b16 %v27
  %v167 = vunpack.c.l.b16 %v28
  %v168 = vunpack.c.l.b16 %v29
  %v169 = vunpack.c.l.b16 %v30
  %v170 = vunpack.c.l.b16 %v31
  %v171 = vunpack.c.l.b16 %v32
  %v172 = vunpack.c.l.b16 %v33
  %v173 = vpack.c.b16 %v165, %v164
  %v174 = vpack.c.b16 %v167, %v166
  %v175 = vpack.c.b16 %v169, %v168
  %v176 = vpack.c.b16 %v171, %v170
  %v177 = vpack.c.b16 %v172, %v172
  %v183 = vsel %vm85, %v153, 0
  %v186 = vsel %vm85, %v154, 0
  %v189 = vsel %vm92, %v177, 0
  %191 = vmatprep.subr.bf16.mxu0 0
  %192 = vmatpush1.bf16.msra.mxu0 %v173
  %193 = vmatprep.subr.bf16.mxu0 0
  %194 = vmatpush1.bf16.msra.mxu0 %v174
  %195 = vmatprep.subr.bf16.mxu0 0
  %196 = vmatpush1.bf16.msra.mxu0 %v175
  %197 = vmatprep.subr.bf16.mxu0 0
  %198 = vmatpush1.bf16.msra.mxu0 %v176
  %199 = vmatprep.subr.bf16.mxu0 0
  %200 = vmatpush1.bf16.msra.mxu0 %v189
  %201 = vmatprep.subr.bf16.mxu0 0
  %202 = vmatpush1.bf16.msra.mxu0 0
  %203 = vmatprep.subr.bf16.mxu0 0
  %204 = vmatpush1.bf16.msra.mxu0 0
  %205 = vmatprep.subr.bf16.mxu0 0
  %206 = vmatpush1.bf16.msra.mxu0 0
  %207 = vmatprep.subr.bf16.mxu0 0
  %208 = vmatpush1.bf16.msra.mxu0 0
  %209 = vmatprep.subr.bf16.mxu0 0
  %210 = vmatpush1.bf16.msra.mxu0 0
  %211 = vmatprep.subr.bf16.mxu0 0
  %212 = vmatpush1.bf16.msra.mxu0 0
  %213 = vmatprep.subr.bf16.mxu0 0
  %214 = vmatpush1.bf16.msra.mxu0 0
  %215 = vmatprep.subr.bf16.mxu0 0
  %216 = vmatpush1.bf16.msra.mxu0 0
  %217 = vmatprep.subr.bf16.mxu0 0
  %218 = vmatpush1.bf16.msra.mxu0 0
  %219 = vmatprep.subr.bf16.mxu0 0
  %220 = vmatpush1.bf16.msra.mxu0 0
  %221 = vmatprep.subr.bf16.mxu0 0
  %222 = vmatpush1.bf16.msra.mxu0 0
  %223 = vmatprep.mubr.bf16.mxu0 0
  %224 = vmatmul.mubr.bf16.gmra.mrb[0].mxu0 %v183
  %v225 = vpop.f32.mrb[0].mxu0
  %v226 = vadd.f32 %v131, %v225
  %v227 = vpop.f32.mrb[0].mxu0
  %v228 = vpop.f32.mrb[0].mxu0
  %v229 = vadd.f32 %v134, %v228
  %v230 = vpop.f32.mrb[0].mxu0
  %231 = vmatprep.mubr.bf16.mxu0 0
  %232 = vmatmul.mubr.bf16.gmra.mrb[0].mxu0 %v186
  %v233 = vpop.f32.mrb[0].mxu0
  %v234 = vadd.f32 %v139, %v233
  %v235 = vpop.f32.mrb[0].mxu0
  %v236 = vpop.f32.mrb[0].mxu0
  %v237 = vadd.f32 %v142, %v236
  %v238 = vpop.f32.mrb[0].mxu0
  %239 = vdwg.mxu0
  %v240 = vld [vmem:[%s2] sm:$0xf]
  %v241 = vld [vmem:[%s2 + $0x4] sm:$0xf]
  %v242 = vld [vmem:[%s2 + $0x8] sm:$0xf]
  %v243 = vld [vmem:[%s2 + $0xc] sm:$0xf]
  %s244 = scalar_lea.vmem %s3, 72
  %v245 = vld [vmem:[%s244] sm:$0xf]
  %v246 = vld [vmem:[%s244 + $0x4] sm:$0xf]
  %v247 = vld [vmem:[%s244 + $0x8] sm:$0xf]
  %v248 = vld [vmem:[%s244 + $0xc] sm:$0xf]
  %v249 = vld [vmem:[%s244 + $0x10] sm:$0xf]
  %v250 = vld [vmem:[%s244 + $0x14] sm:$0xf]
  %v251 = vld [vmem:[%s244 + $0x18] sm:$0xf]
  %v252 = vld [vmem:[%s244 + $0x1c] sm:$0xf]
  %v253 = vld [vmem:[%s244 + $0x20] sm:$0xf]
  %v258 = vunpack.c.l.b16 %v240
  %v259 = vunpack.c.l.b16 %v241
  %v260 = vunpack.c.l.b16 %v242
  %v261 = vunpack.c.l.b16 %v243
  %v262 = vpack.c.b16 %v259, %v258
  %v263 = vpack.c.b16 %v261, %v260
  %v273 = vunpack.c.l.b16 %v245
  %v274 = vunpack.c.l.b16 %v246
  %v275 = vunpack.c.l.b16 %v247
  %v276 = vunpack.c.l.b16 %v248
  %v277 = vunpack.c.l.b16 %v249
  %v278 = vunpack.c.l.b16 %v250
  %v279 = vunpack.c.l.b16 %v251
  %v280 = vunpack.c.l.b16 %v252
  %v281 = vunpack.c.l.b16 %v253
  %v282 = vpack.c.b16 %v274, %v273
  %v283 = vpack.c.b16 %v276, %v275
  %v284 = vpack.c.b16 %v278, %v277
  %v285 = vpack.c.b16 %v280, %v279
  %v286 = vpack.c.b16 %v281, %v281
  %v292 = vsel %vm85, %v262, 0
  %v295 = vsel %vm85, %v263, 0
  %v298 = vsel %vm92, %v286, 0
  %300 = vmatprep.subr.bf16.mxu0 0
  %301 = vmatpush1.bf16.msra.mxu0 %v282
  %302 = vmatprep.subr.bf16.mxu0 0
  %303 = vmatpush1.bf16.msra.mxu0 %v283
  %304 = vmatprep.subr.bf16.mxu0 0
  %305 = vmatpush1.bf16.msra.mxu0 %v284
  %306 = vmatprep.subr.bf16.mxu0 0
  %307 = vmatpush1.bf16.msra.mxu0 %v285
  %308 = vmatprep.subr.bf16.mxu0 0
  %309 = vmatpush1.bf16.msra.mxu0 %v298
  %310 = vmatprep.subr.bf16.mxu0 0
  %311 = vmatpush1.bf16.msra.mxu0 0
  %312 = vmatprep.subr.bf16.mxu0 0
  %313 = vmatpush1.bf16.msra.mxu0 0
  %314 = vmatprep.subr.bf16.mxu0 0
  %315 = vmatpush1.bf16.msra.mxu0 0
  %316 = vmatprep.subr.bf16.mxu0 0
  %317 = vmatpush1.bf16.msra.mxu0 0
  %318 = vmatprep.subr.bf16.mxu0 0
  %319 = vmatpush1.bf16.msra.mxu0 0
  %320 = vmatprep.subr.bf16.mxu0 0
  %321 = vmatpush1.bf16.msra.mxu0 0
  %322 = vmatprep.subr.bf16.mxu0 0
  %323 = vmatpush1.bf16.msra.mxu0 0
  %324 = vmatprep.subr.bf16.mxu0 0
  %325 = vmatpush1.bf16.msra.mxu0 0
  %326 = vmatprep.subr.bf16.mxu0 0
  %327 = vmatpush1.bf16.msra.mxu0 0
  %328 = vmatprep.subr.bf16.mxu0 0
  %329 = vmatpush1.bf16.msra.mxu0 0
  %330 = vmatprep.subr.bf16.mxu0 0
  %331 = vmatpush1.bf16.msra.mxu0 0
  %332 = vmatprep.mubr.bf16.mxu0 0
  %333 = vmatmul.mubr.bf16.gmra.mrb[0].mxu0 %v292
  %v334 = vpop.f32.mrb[0].mxu0
  %v335 = vadd.f32 0.0, %v334
  %v336 = vpop.f32.mrb[0].mxu0
  %v337 = vpop.f32.mrb[0].mxu0
  %v338 = vadd.f32 0.0, %v337
  %v339 = vpop.f32.mrb[0].mxu0
  %340 = vmatprep.mubr.bf16.mxu0 0
  %341 = vmatmul.mubr.bf16.gmra.mrb[0].mxu0 %v295
  %v342 = vpop.f32.mrb[0].mxu0
  %v343 = vadd.f32 0.0, %v342
  %v344 = vpop.f32.mrb[0].mxu0
  %v345 = vpop.f32.mrb[0].mxu0
  %v346 = vadd.f32 0.0, %v345
  %v347 = vpop.f32.mrb[0].mxu0
  %348 = vdwg.mxu0
  %v349 = vadd.f32 %v226, %v335
  %v350 = vadd.f32 %v229, %v338
  %v351 = vadd.f32 %v234, %v343
  %v352 = vadd.f32 %v237, %v346
  %v353 = vld [vmem:[%s4] sm:$0x1]
  %v355 = vlaneseq
  %v356 = vshrl.u32 %v355, 7
  %v357 = vsub.s32 0, %v356
  %v358 = vrot.slane %v353, %v357
  %v360 = vadd.f32 %v349, %v358
  %v361 = vadd.f32 %v350, %v358
  %v362 = vadd.f32 %v351, %v358
  %v363 = vadd.f32 %v352, %v358
  %v364 = vmax.f32 %v360, 0.0
  %v365 = vmax.f32 %v361, 0.0
  %v366 = vmax.f32 %v362, 0.0
  %v367 = vmax.f32 %v363, 0.0
  %368 = vst [vmem:[%s5] sm:$0xff] %v364
  %369 = vst [vmem:[%s5 + $0x8] sm:$0xff] %v365
  %370 = vst [vmem:[%s5 + $0x10] sm:$0xff] %v366
  %371 = vst [vmem:[%s5 + $0x18] sm:$0xff] %v367
  // Predicated region
  $region22: #{custom_data_parallel_forward.1} parent=0 // pred_check
    _
  $region23: #{custom_data_parallel_forward.1} parent=0 // pred_check_branch
    %373 = sbr.rel (0) target = $region25
  $region24: #{custom_data_parallel_forward.1} parent=0 // pred_region
    _
  $region25: #{custom_data_parallel_forward.1} parent=0 // pred_fallthru
    _
  // Predicated region
  $region26: #{custom_data_parallel_forward.1} parent=0 // pred_check
    _
  $region27: #{custom_data_parallel_forward.1} parent=0 // pred_check_branch
    %375 = sbr.rel (0) target = $region29
  $region28: #{custom_data_parallel_forward.1} parent=0 // pred_region
    _
  $region29: #{custom_data_parallel_forward.1} parent=0 // pred_fallthru
    _

</llo_original>
